<compile_context>
chip_gen: v6e
topology: v6e:2x2x1
jax: 0.10.0
libtpu: 0.0.40
codegen_flags: <defaults>
</compile_context>

<pallas_src>
import math

import jax
import jax.numpy as jnp
from jax.experimental import pallas as pl
from jax.experimental.pallas import tpu as pltpu


def mine_kernel(xz_ref, w1_ref, b1_ref, w2t_ref, b2_ref, out_ref):
    xz = xz_ref[...]          # (2N, D)  rows [0,N) = joint, rows [N,2N) = marginal
    w1 = w1_ref[...]          # (D, H)
    b1 = b1_ref[...]          # (1, H)
    w2t = w2t_ref[...]        # (1, H)
    b2 = b2_ref[0, 0]         # scalar (SMEM)

    n = xz.shape[0] // 2

    # Single lane-dense layer-1 matmul for both branches, then bias + ReLU.
    a = jnp.maximum(
        jnp.dot(xz, w1, preferred_element_type=jnp.float32) + b1, 0.0)  # (2N, H)

    h = a[:n, :]     # joint hidden activations     (N, H)
    hm = a[n:, :]    # marginal hidden activations  (N, H)

    # mean(T(x,z)) = (mean over rows of h) . w2 + b2   (linearity of layer 2)
    h_mean = jnp.mean(h, axis=0, keepdims=True)          # (1, H)  XLU sublane reduce
    t_mean = jnp.sum(h_mean * w2t) + b2                  # scalar  VPU + lane reduce

    # Marginal T values: VPU multiply + lane reduce (no 1-wide MXU output).
    tm = jnp.sum(hm * w2t, axis=-1, keepdims=True) + b2  # (N, 1)

    # second_term = log(mean(exp(tm))) computed stably.
    m = jnp.max(tm)
    second_term = m + jnp.log(jnp.mean(jnp.exp(tm - m)))

    out_ref[0, 0] = -t_mean + second_term


def mine_forward(x, z, z_marg, w1, b1, w2, b2):
    # Build the stacked, concatenated operand in plain JAX (cheap, lane-dense).
    xz = jnp.concatenate([x, z], axis=1)          # (N, D)
    xzm = jnp.concatenate([x, z_marg], axis=1)    # (N, D)
    stacked = jnp.concatenate([xz, xzm], axis=0)  # (2N, D)
    w2t = w2.T                                    # (1, H)

    vmem = pl.BlockSpec(memory_space=pltpu.MemorySpace.VMEM)
    smem = pl.BlockSpec(memory_space=pltpu.MemorySpace.SMEM)

    out = pl.pallas_call(
        mine_kernel,
        out_shape=jax.ShapeDtypeStruct((1, 1), jnp.float32),
        in_specs=[vmem, vmem, vmem, vmem, smem],
        out_specs=smem,
    )(stacked, w1, b1, w2t, b2)
    return out[0, 0]


def mine_forward_ref(x, z, z_marg, w1, b1, w2, b2):
    """Plain-JAX reference (mirrors the PyTorch Mine.forward with loss='mine')."""
    def T(a, b):
        h = jnp.maximum(jnp.concatenate([a, b], axis=1) @ w1 + b1, 0.0)
        return h @ w2 + b2
    t = jnp.mean(T(x, z))
    tm = T(x, z_marg)
    second = jax.scipy.special.logsumexp(tm.reshape(-1)) - math.log(tm.shape[0])
    return -t + second


if __name__ == "__main__":
    N, Dx, Dz, H = 8, 64, 64, 128

    key = jax.random.PRNGKey(0)
    kx, kz, kp, kw1, kb1, kw2, kb2 = jax.random.split(key, 7)

    x = jax.random.normal(kx, (N, Dx), dtype=jnp.float32)
    z = jax.random.normal(kz, (N, Dz), dtype=jnp.float32)

    # z_marg = z[randperm(N)]   (deterministic permutation, done in plain JAX)
    perm = jax.random.permutation(kp, N)
    z_marg = z[perm]

    # Deterministic parameter init (PyTorch Linear-style uniform +-1/sqrt(fan_in)).
    D = Dx + Dz
    lim1 = 1.0 / math.sqrt(D)
    lim2 = 1.0 / math.sqrt(H)
    w1 = jax.random.uniform(kw1, (D, H), minval=-lim1, maxval=lim1,
                            dtype=jnp.float32)
    b1 = jax.random.uniform(kb1, (1, H), minval=-lim1, maxval=lim1,
                            dtype=jnp.float32)
    w2 = jax.random.uniform(kw2, (H, 1), minval=-lim2, maxval=lim2,
                            dtype=jnp.float32)
    b2 = jax.random.uniform(kb2, (1, 1), minval=-lim2, maxval=lim2,
                            dtype=jnp.float32)

    loss = mine_forward(x, z, z_marg, w1, b1, w2, b2)
    jax.block_until_ready(loss)

    ref = mine_forward_ref(x, z, z_marg, w1, b1, w2, b2)
    assert jnp.allclose(loss, ref, atol=1e-5, rtol=1e-5), (loss, ref)

    print("KERNEL_OK")
</pallas_src>

<mosaic_0001>
module attributes {stable_mosaic.version = 11 : i64} {
  func.func @mine_kernel(%arg0: memref<16x128xf32, #tpu.memory_space<vmem>>, %arg1: memref<128x128xf32, #tpu.memory_space<vmem>>, %arg2: memref<1x128xf32, #tpu.memory_space<vmem>>, %arg3: memref<1x128xf32, #tpu.memory_space<vmem>>, %arg4: memref<1x1xf32, #tpu.memory_space<smem>>, %arg5: memref<1x1xf32, #tpu.memory_space<smem>>) attributes {dimension_semantics = [], scalar_prefetch = 0 : i64, scratch_operands = 0 : i64, tpu.core_type = #tpu.core_type<tc>} {
    %c0 = arith.constant 0 : index
    %c0_0 = arith.constant 0 : index
    %0 = vector.load %arg0[%c0, %c0_0] : memref<16x128xf32, #tpu.memory_space<vmem>>, vector<16x128xf32>
    %c0_1 = arith.constant 0 : index
    %c0_2 = arith.constant 0 : index
    %1 = vector.load %arg1[%c0_1, %c0_2] : memref<128x128xf32, #tpu.memory_space<vmem>>, vector<128x128xf32>
    %c0_3 = arith.constant 0 : index
    %c0_4 = arith.constant 0 : index
    %2 = vector.load %arg2[%c0_3, %c0_4] : memref<1x128xf32, #tpu.memory_space<vmem>>, vector<1x128xf32>
    %c0_5 = arith.constant 0 : index
    %c0_6 = arith.constant 0 : index
    %3 = vector.load %arg3[%c0_5, %c0_6] : memref<1x128xf32, #tpu.memory_space<vmem>>, vector<1x128xf32>
    %c0_7 = arith.constant 0 : index
    %c0_8 = arith.constant 0 : index
    %4 = memref.load %arg4[%c0_7, %c0_8] : memref<1x1xf32, #tpu.memory_space<smem>>
    %cst = arith.constant dense<0.000000e+00> : vector<16x128xf32>
    %5 = tpu.matmul %0, %1, %cst {dimension_numbers = #tpu.dot_dimension_numbers<[1], [0], [0], [1], [0, 0, 1, 1], [], []>} : vector<16x128xf32>, vector<128x128xf32>, vector<16x128xf32> -> vector<16x128xf32>
    %6 = vector.broadcast %2 : vector<1x128xf32> to vector<16x128xf32>
    %7 = arith.addf %5, %6 : vector<16x128xf32>
    %cst_9 = arith.constant 0.000000e+00 : f32
    %8 = vector.broadcast %cst_9 : f32 to vector<16x128xf32>
    %9 = arith.maximumf %7, %8 : vector<16x128xf32>
    %10 = vector.extract_strided_slice %9 {offsets = [0, 0], sizes = [8, 128], strides = [1, 1]} : vector<16x128xf32> to vector<8x128xf32>
    %11 = vector.extract_strided_slice %9 {offsets = [8, 0], sizes = [8, 128], strides = [1, 1]} : vector<16x128xf32> to vector<8x128xf32>
    %cst_10 = arith.constant dense<0.000000e+00> : vector<128xf32>
    %12 = vector.multi_reduction <add>, %10, %cst_10 [0] : vector<8x128xf32> to vector<128xf32>
    %13 = vector.shape_cast %12 : vector<128xf32> to vector<1x128xf32>
    %cst_11 = arith.constant 8.000000e+00 : f32
    %14 = vector.broadcast %cst_11 : f32 to vector<1x128xf32>
    %15 = arith.divf %13, %14 : vector<1x128xf32>
    %16 = arith.mulf %15, %3 : vector<1x128xf32>
    %17 = vector.shape_cast %16 : vector<1x128xf32> to vector<1x1x128xf32>
    %cst_12 = arith.constant dense<0.000000e+00> : vector<1xf32>
    %18 = vector.multi_reduction <add>, %17, %cst_12 [1, 2] : vector<1x1x128xf32> to vector<1xf32>
    %19 = vector.shape_cast %18 : vector<1xf32> to vector<1x1x1xf32>
    %20 = vector.extract %19[0, 0, 0] : f32 from vector<1x1x1xf32>
    %21 = arith.addf %20, %4 : f32
    %22 = vector.broadcast %3 : vector<1x128xf32> to vector<8x128xf32>
    %23 = arith.mulf %11, %22 : vector<8x128xf32>
    %cst_13 = arith.constant dense<0.000000e+00> : vector<8xf32>
    %24 = vector.multi_reduction <add>, %23, %cst_13 [1] : vector<8x128xf32> to vector<8xf32>
    %25 = vector.shape_cast %24 : vector<8xf32> to vector<8x1xf32>
    %26 = vector.broadcast %4 : f32 to vector<8x1xf32>
    %27 = arith.addf %25, %26 : vector<8x1xf32>
    %28 = vector.shape_cast %27 : vector<8x1xf32> to vector<1x8x1xf32>
    %cst_14 = arith.constant dense<0xFF800000> : vector<1xf32>
    %29 = vector.multi_reduction <maximumf>, %28, %cst_14 [1, 2] : vector<1x8x1xf32> to vector<1xf32>
    %30 = vector.shape_cast %29 : vector<1xf32> to vector<1x1x1xf32>
    %31 = vector.extract %30[0, 0, 0] : f32 from vector<1x1x1xf32>
    %32 = vector.broadcast %31 : f32 to vector<8x1xf32>
    %33 = arith.subf %27, %32 : vector<8x1xf32>
    %34 = math.exp %33 : vector<8x1xf32>
    %35 = vector.shape_cast %34 : vector<8x1xf32> to vector<1x8x1xf32>
    %cst_15 = arith.constant dense<0.000000e+00> : vector<1xf32>
    %36 = vector.multi_reduction <add>, %35, %cst_15 [1, 2] : vector<1x8x1xf32> to vector<1xf32>
    %37 = vector.shape_cast %36 : vector<1xf32> to vector<1x1x1xf32>
    %38 = vector.extract %37[0, 0, 0] : f32 from vector<1x1x1xf32>
    %cst_16 = arith.constant 8.000000e+00 : f32
    %39 = arith.divf %38, %cst_16 : f32
    %40 = math.log %39 : f32
    %41 = arith.addf %31, %40 : f32
    %cst_17 = arith.constant 0.000000e+00 : f32
    %42 = arith.subf %cst_17, %21 : f32
    %43 = arith.addf %42, %41 : f32
    %c0_18 = arith.constant 0 : index
    %c0_19 = arith.constant 0 : index
    %44 = memref.load %arg5[%c0_18, %c0_19] : memref<1x1xf32, #tpu.memory_space<smem>>
    memref.store %43, %arg5[%c0_18, %c0_19] : memref<1x1xf32, #tpu.memory_space<smem>>
    return
  }
}

</mosaic_0001>

<llo_original>
// kernel: tpu_custom_call.1
$region0: #{tpu_custom_call.1}
  #allocation0 [shape = 'u32[]', space=smem, size = 0x4, offset = 0x4, fixed_abs, tag = 'smem constant byte address 0x4 - core index']
  #allocation1 [shape = 'u32[144,128]{1,0:T(1,128)}', space=vmem, size = 0x12000, scoped, tag = 'internal scratch']
  #allocation2 [shape = 'f32[1,1]{1,0:T(1,128)S(6)}', space=smem, size = 0x200, scoped, tag = 'scoped memory for tpu_custom_call.1']
  %s0 = inlined_call_operand.hbm [shape: f32[16,128], index: 0, kind: input, shape index: {}]
  %s1 = inlined_call_operand.hbm [shape: f32[128,128], index: 1, kind: input, shape index: {}]
  %s2 = inlined_call_operand.vmem [shape: f32[1,128], index: 2, kind: input, shape index: {}]
  %s3 = inlined_call_operand.vmem [shape: f32[1,128], index: 3, kind: input, shape index: {}]
  %s4 = inlined_call_operand.<no memory space> [shape: f32[1,1], index: 4, kind: input, shape index: {}]
  %s5 = inlined_call_operand.hbm [shape: f32[1,1], index: 5, kind: output, shape index: {}]
  %s6 = sld [smem:[#allocation0]]
  $region38: #{tpu_custom_call.1} parent=0
    _
  %s8 = ssub.s32 1, %s6
  %s9 = scalar_select 0, %s8, %s6
  %10 = sst [smem:[#allocation2]] %s4
  $region1: #{tpu_custom_call.1} parent=0
    #allocation3 [shape = 'u8[8192]{0}', space=vmem, size = 0x2000, scoped, tag = 'input window, operand 0, single buffered']
    #allocation4 [shape = 's32[1]{0}', space=sflag, size = 0x4, scoped, tag = 'scoped memory for tpu_custom_call.1']
    #allocation5 [shape = 's32[1]{0}', space=sflag, size = 0x4, scoped, tag = 'scoped memory for tpu_custom_call.1']
    #allocation6 [shape = 'u8[65536]{0}', space=vmem, size = 0x10000, scoped, tag = 'input window, operand 1, single buffered']
    #allocation7 [shape = 's32[1]{0}', space=sflag, size = 0x4, scoped, tag = 'scoped memory for tpu_custom_call.1']
    #allocation8 [shape = 'u8[512]{0}', space=smem, size = 0x200, scoped, tag = 'output window, operand 0, single buffered']
    %11 = vsyncpa [#allocation4], 0
    %12 = vsyncpa [#allocation7], 0
    %13 = vsyncpa [#allocation5], 0
    // Predicated region
    $region2: #{tpu_custom_call.1} parent=1 // pred_check
      _
    $region3: #{tpu_custom_call.1} parent=1 // pred_check_branch
      %15 = sbr.rel (0) target = $region5
    $region4: #{tpu_custom_call.1} parent=1 // pred_region
      %s17 = ssub.s32 256, 256
      %18 = vsyncadd [#allocation4], %s17
      %s19 = sshll.u32 [#allocation3], 4
      %s20 = int_to_ptr.vmem [resolvable:$true] %s19
      %25 = dma.hbm_to_vmem [thread:$0]  %s0, 256, %s20, [#allocation4], 128, 128, 8
    $region5: #{tpu_custom_call.1} parent=1 // pred_fallthru
      _
    // Predicated region
    $region6: #{tpu_custom_call.1} parent=1 // pred_check
      _
    $region7: #{tpu_custom_call.1} parent=1 // pred_check_branch
      %27 = sbr.rel (0) target = $region9
    $region8: #{tpu_custom_call.1} parent=1 // pred_region
      %s29 = ssub.s32 2048, 2048
      %30 = vsyncadd [#allocation7], %s29
      %s31 = sshll.u32 [#allocation6], 4
      %s32 = int_to_ptr.vmem [resolvable:$true] %s31
      %37 = dma.hbm_to_vmem [thread:$0]  %s1, 2048, %s32, [#allocation7], 128, 128, 8
    $region9: #{tpu_custom_call.1} parent=1 // pred_fallthru
      _
    // Predicated region
    $region10: #{tpu_custom_call.1} parent=1 // pred_check
      _
    $region11: #{tpu_custom_call.1} parent=1 // pred_check_branch
      %39 = sbr.rel (0) target = $region13
    $region12: #{tpu_custom_call.1} parent=1 // pred_region
      _
    $region13: #{tpu_custom_call.1} parent=1 // pred_fallthru
      _
    // Predicated region
    $region14: #{tpu_custom_call.1} parent=1 // pred_check
      _
    $region15: #{tpu_custom_call.1} parent=1 // pred_check_branch
      %41 = sbr.rel (0) target = $region17
    $region16: #{tpu_custom_call.1} parent=1 // pred_region
      _
    $region17: #{tpu_custom_call.1} parent=1 // pred_fallthru
      _
    // Predicated region
    $region18: #{tpu_custom_call.1} parent=1 // pred_check
      _
    $region19: #{tpu_custom_call.1} parent=1 // pred_check_branch
      %43 = sbr.rel (0) target = $region21
    $region20: #{tpu_custom_call.1} parent=1 // pred_region
      _
    $region21: #{tpu_custom_call.1} parent=1 // pred_fallthru
      _
    // Predicated region
    $region22: #{tpu_custom_call.1} parent=1 // pred_check
      _
    $region23: #{tpu_custom_call.1} parent=1 // pred_check_branch
      %45 = sbr.rel (0) target = $region25
    $region24: #{tpu_custom_call.1} parent=1 // pred_region
      %46 = dma.done [#allocation4], 256
    $region25: #{tpu_custom_call.1} parent=1 // pred_fallthru
      _
    // Predicated region
    $region26: #{tpu_custom_call.1} parent=1 // pred_check
      _
    $region27: #{tpu_custom_call.1} parent=1 // pred_check_branch
      %48 = sbr.rel (0) target = $region29
    $region28: #{tpu_custom_call.1} parent=1 // pred_region
      %49 = dma.done [#allocation7], 2048
    $region29: #{tpu_custom_call.1} parent=1 // pred_fallthru
      _
    %v50 = vld [vmem:[#allocation3] sm:$0xff]
    %v51 = vld [vmem:[#allocation3 + $0x8] sm:$0xff]
    %v52 = vld [vmem:[#allocation6] sm:$0xff]
    %v53 = vld [vmem:[#allocation6 + $0x8] sm:$0xff]
    %v54 = vld [vmem:[#allocation6 + $0x10] sm:$0xff]
    %v55 = vld [vmem:[#allocation6 + $0x18] sm:$0xff]
    %v56 = vld [vmem:[#allocation6 + $0x20] sm:$0xff]
    %v57 = vld [vmem:[#allocation6 + $0x28] sm:$0xff]
    %v58 = vld [vmem:[#allocation6 + $0x30] sm:$0xff]
    %v59 = vld [vmem:[#allocation6 + $0x38] sm:$0xff]
    %v60 = vld [vmem:[#allocation6 + $0x40] sm:$0xff]
    %v61 = vld [vmem:[#allocation6 + $0x48] sm:$0xff]
    %v62 = vld [vmem:[#allocation6 + $0x50] sm:$0xff]
    %v63 = vld [vmem:[#allocation6 + $0x58] sm:$0xff]
    %v64 = vld [vmem:[#allocation6 + $0x60] sm:$0xff]
    %v65 = vld [vmem:[#allocation6 + $0x68] sm:$0xff]
    %v66 = vld [vmem:[#allocation6 + $0x70] sm:$0xff]
    %v67 = vld [vmem:[#allocation6 + $0x78] sm:$0xff]
    %v68 = vld [vmem:[%s2] sm:$0x1]
    %v69 = vld [vmem:[%s3] sm:$0x1]
    %s70 = sld [smem:[#allocation2]]
    %v72 = vlaneseq
    %v73 = vshrl.u32 %v72, 7
    %v74 = vsub.s32 0, %v73
    %v75 = vrot.slane %v68, %v74
    %77 = vmatprep.subr.mxu0 0.0
    %78 = vmatpush1.msra.mxu0 %v67
    %79 = vmatprep.subr.mxu0 0.0
    %80 = vmatpush1.msra.mxu0 %v66
    %81 = vmatprep.subr.mxu0 0.0
    %82 = vmatpush1.msra.mxu0 %v65
    %83 = vmatprep.subr.mxu0 0.0
    %84 = vmatpush1.msra.mxu0 %v64
    %85 = vmatprep.subr.mxu0 0.0
    %86 = vmatpush1.msra.mxu0 %v63
    %87 = vmatprep.subr.mxu0 0.0
    %88 = vmatpush1.msra.mxu0 %v62
    %89 = vmatprep.subr.mxu0 0.0
    %90 = vmatpush1.msra.mxu0 %v61
    %91 = vmatprep.subr.mxu0 0.0
    %92 = vmatpush1.msra.mxu0 %v60
    %93 = vmatprep.subr.mxu0 0.0
    %94 = vmatpush1.msra.mxu0 %v59
    %95 = vmatprep.subr.mxu0 0.0
    %96 = vmatpush1.msra.mxu0 %v58
    %97 = vmatprep.subr.mxu0 0.0
    %98 = vmatpush1.msra.mxu0 %v57
    %99 = vmatprep.subr.mxu0 0.0
    %100 = vmatpush1.msra.mxu0 %v56
    %101 = vmatprep.subr.mxu0 0.0
    %102 = vmatpush1.msra.mxu0 %v55
    %103 = vmatprep.subr.mxu0 0.0
    %104 = vmatpush1.msra.mxu0 %v54
    %105 = vmatprep.subr.mxu0 0.0
    %106 = vmatpush1.msra.mxu0 %v53
    %107 = vmatprep.subr.mxu0 0.0
    %108 = vmatpush1.msra.mxu0 %v52
    %109 = vmatprep.subr.mxu0 0.0
    %110 = vmatpush2.msra.mxu0 0.0
    %111 = vmatprep.subr.mxu0 0.0
    %112 = vmatpush2.msra.mxu0 0.0
    %113 = vmatprep.subr.mxu0 0.0
    %114 = vmatpush2.msra.mxu0 0.0
    %115 = vmatprep.subr.mxu0 0.0
    %116 = vmatpush2.msra.mxu0 0.0
    %117 = vmatprep.subr.mxu0 0.0
    %118 = vmatpush2.msra.mxu0 0.0
    %119 = vmatprep.subr.mxu0 0.0
    %120 = vmatpush2.msra.mxu0 0.0
    %121 = vmatprep.subr.mxu0 0.0
    %122 = vmatpush2.msra.mxu0 0.0
    %123 = vmatprep.subr.mxu0 0.0
    %124 = vmatpush2.msra.mxu0 0.0
    %125 = vmatprep.subr.mxu0 0.0
    %126 = vmatpush2.msra.mxu0 0.0
    %127 = vmatprep.subr.mxu0 0.0
    %128 = vmatpush2.msra.mxu0 0.0
    %129 = vmatprep.subr.mxu0 0.0
    %130 = vmatpush2.msra.mxu0 0.0
    %131 = vmatprep.subr.mxu0 0.0
    %132 = vmatpush2.msra.mxu0 0.0
    %133 = vmatprep.subr.mxu0 0.0
    %134 = vmatpush2.msra.mxu0 0.0
    %135 = vmatprep.subr.mxu0 0.0
    %136 = vmatpush2.msra.mxu0 0.0
    %137 = vmatprep.subr.mxu0 0.0
    %138 = vmatpush2.msra.mxu0 0.0
    %139 = vmatprep.subr.mxu0 0.0
    %140 = vmatpush2.msra.mxu0 0.0
    %141 = vmatprep.mubr.f32.mxu0 0.0
    %142 = vmatmul.mubr.f32.gmra.mxu0 %v50
    %v143 = vpop.f32.mrf.mxu0
    %v144 = vadd.f32 %v75, %v143
    %v145 = vpop.f32.mrf.mxu0
    %146 = vmatprep.mubr.f32.mxu0 0.0
    %147 = vmatmul.mubr.f32.gmra.mxu0 %v51
    %v148 = vpop.f32.mrf.mxu0
    %v149 = vadd.f32 %v75, %v148
    %v150 = vpop.f32.mrf.mxu0
    %151 = vdwg.mxu0
    %v152 = vmax.f32 %v144, 0.0
    %v153 = vmax.f32 %v149, 0.0
    %v154 = vrot.slane %v152, 4
    %v155 = vadd.f32 %v152, %v154
    %v156 = vrot.slane %v155, 2
    %v157 = vadd.f32 %v155, %v156
    %v158 = vrot.slane %v157, 1
    %v159 = vadd.f32 %v157, %v158
    %v160 = vrcp.pop 8.0
    %v161 = vmul.f32 %v159, %v160
    %v162 = vmul.f32 %v161, %v69
    %vm163 = vcmask 1040384
    %v164 = vsel %vm163, %v162, 0.0
    %165 = vadd.xlane.f32.xlu0 %v164
    %v166 = vpop.xlane.xlu0 %165
    %v167 = vrot.slane %v166, 4
    %v168 = vadd.f32 %v166, %v167
    %v169 = vrot.slane %v168, 2
    %v170 = vadd.f32 %v168, %v169
    %v171 = vrot.slane %v170, 1
    %v172 = vadd.f32 %v170, %v171
    %s173 = vtos %v172
    %s174 = sadd.f32 %s173, %s70
    %v176 = vlaneseq
    %v177 = vshrl.u32 %v176, 7
    %v178 = vsub.s32 0, %v177
    %v179 = vrot.slane %v69, %v178
    %v181 = vmul.f32 %v153, %v179
    %182 = vadd.xlane.f32.xlu0 %v181
    %v183 = vpop.xlane.xlu0 %182
    %v184 = vstv %s70
    %v185 = vadd.f32 %v183, %v184
    %v186 = vrot.slane %v185, 4
    %v187 = vmax.f32 %v185, %v186
    %v188 = vrot.slane %v187, 2
    %v189 = vmax.f32 %v187, %v188
    %v190 = vrot.slane %v189, 1
    %v191 = vmax.f32 %v189, %v190
    %s192 = vtos %v191
    %v193 = vstv %s192
    %v194 = vsub.f32 %v185, %v193
    %v195 = vmul.f32 %v194, 1.442695
    %v196 = vpow.pop %v195
    %vm197 = vcmask 7168
    %v198 = vsel %vm197, %v196, 0.0
    %199 = vadd.xlane.f32.xlu0 %v198
    %v200 = vpop.xlane.xlu0 %199
    %v201 = vrot.slane %v200, 4
    %v202 = vadd.f32 %v200, %v201
    %v203 = vrot.slane %v202, 2
    %v204 = vadd.f32 %v202, %v203
    %v205 = vrot.slane %v204, 1
    %v206 = vadd.f32 %v204, %v205
    %s207 = vtos %v206
    %v208 = vrcp.pop 8.0
    %s209 = vtos %v208
    %s210 = smul.f32 %s207, %s209
    %v211 = vstv %s210
    %v212 = vlog2.pop %v211
    %v213 = vmul.f32 %v212, 0.6931472
    %s214 = vtos %v213
    %s215 = sadd.f32 %s192, %s214
    %s216 = ssub.f32 0.0, %s174
    %s217 = sadd.f32 %s216, %s215
    %s218 = scalar_lea.smem [#allocation8], 0
    %219 = sst [smem:[%s218]] %s217
    // Predicated region
    $region30: #{tpu_custom_call.1} parent=1 // pred_check
      _
    $region31: #{tpu_custom_call.1} parent=1 // pred_check_branch
      %221 = sbr.rel (0) target = $region33
    $region32: #{tpu_custom_call.1} parent=1 // pred_region
      %s223 = ssub.s32 16, 16
      %224 = vsyncadd [#allocation5], %s223
      %227 = dma.smem_to_hbm [#allocation8], 16, %s5, [#allocation5]
    $region33: #{tpu_custom_call.1} parent=1 // pred_fallthru
      _
    // Predicated region
    $region34: #{tpu_custom_call.1} parent=1 // pred_check
      _
    $region35: #{tpu_custom_call.1} parent=1 // pred_check_branch
      %229 = sbr.rel (0) target = $region37
    $region36: #{tpu_custom_call.1} parent=1 // pred_region
      %230 = dma.done [#allocation5], 16
    $region37: #{tpu_custom_call.1} parent=1 // pred_fallthru
      _
    %231 = sfence
    %232 = vsyncpa [#allocation4], 1
    %233 = vsyncpa [#allocation7], 1
    %234 = vsyncpa [#allocation5], 1

</llo_original>
